<compile_context>
chip_gen: v5e
topology: v5e:2x2
jax: 0.10.0
libtpu: 0.0.40
codegen_flags: <defaults>
</compile_context>

<pallas_src>
import jax
import jax.numpy as jnp
from jax.experimental import pallas as pl
from jax.experimental.pallas import tpu as pltpu

# ---- dimensions (small, consistent with the synthesized module) -------------
BATCH = 8
D_H      = 64   # first-layer activation width (input to SubModel)
D_ENC1   = 32   # encoder[3] Linear out
D_LAT    = 16   # encoder latent width
D_CLS    = 8    # classifier hidden
N_LOGITS = 2    # disease logits
PAD      = 128  # TPU lane width; in-kernel feature axes padded to this

W_ROWS = D_H + 2 * PAD   # packed weight slab rows: w1 (64) + w23 (128) + w4 (128) = 320


def _submodel_kernel(h_ref, w_ref, v_ref, out_ref):
    cdt = w_ref.dtype                       # compute dtype (f32 or bf16)
    h = h_ref[...].astype(cdt)              # (tile_b, 64); cast (if any) happens on-chip

    # static sublane slices of the packed weight slab (lane-full, 128 wide)
    w1  = w_ref[0:D_H, :]                   # (64, 128)  Linear(64->32), lanes 32.. are 0
    w23 = w_ref[D_H:D_H + PAD, :]           # (128,128)  folded Linear(32->16)@Linear(16->8)
    w4  = w_ref[D_H + PAD:W_ROWS, :]        # (128,128)  classifier Linear(8->2)

    # packed per-feature vectors (f32, zero-padded beyond the valid width)
    s1  = v_ref[0:1, :]                     # folded BN scale        (valid lanes 0:32)
    t1  = v_ref[1:2, :]                     # folded bias+BN shift   (valid lanes 0:32)
    b23 = v_ref[2:3, :]                     # folded bias            (valid lanes 0:8)
    b4  = v_ref[3:4, :]                     # logits bias            (valid lanes 0:2)

    # encoder[3] Linear(64->32) + encoder[4] BN1d(eval, folded) + encoder[5] ReLU
    x = jnp.dot(h, w1, preferred_element_type=jnp.float32)
    x = jnp.maximum(x * s1 + t1, 0.0)       # padded lanes stay exactly 0

    # encoder[6] Linear(32->16) folded with classifier Linear(16->8), then ReLU
    x = jnp.dot(x.astype(cdt), w23, preferred_element_type=jnp.float32) + b23
    x = jnp.maximum(x, 0.0)

    # classifier Linear(8->2); store only the 2 valid logit lanes (masked vst)
    out = jnp.dot(x.astype(cdt), w4, preferred_element_type=jnp.float32) + b4
    out_ref[...] = out[:, :N_LOGITS].astype(out_ref.dtype)


def submodel_forward(h, packed, *, tile_b=None):
    """h: (B, D_H) float32 first-layer activations -> (B, N_LOGITS) float32 logits."""
    w_slab, v_slab = packed
    B = h.shape[0]
    if tile_b is None:
        # Big tiles amortize the ~0.35us/step overhead; cap 4096 keeps double-buffered
        # h (2 x 1 MiB f32) + resident slabs well inside every generation's VMEM budget.
        # Use ~cdiv(B,2) so the "parallel" axis has >=2 steps -> both v7x TCs are used.
        cap = 4096
        half = (B + 1) // 2
        tile_b = min(cap, max(8, ((half + 7) // 8) * 8))
    tile_b = max(8, (tile_b // 8) * 8)      # sublane multiple (use 16 for bf16 packing)
    n_tiles = pl.cdiv(B, tile_b)            # partial last block handled by Pallas

    flops = 2 * B * (D_H * D_ENC1 + D_ENC1 * D_CLS + D_CLS * N_LOGITS)
    bytes_accessed = (B * (D_H * h.dtype.itemsize + N_LOGITS * 4)
                      + w_slab.size * w_slab.dtype.itemsize
                      + v_slab.size * v_slab.dtype.itemsize)

    out = pl.pallas_call(
        _submodel_kernel,
        out_shape=jax.ShapeDtypeStruct((B, N_LOGITS), jnp.float32),
        grid_spec=pltpu.PrefetchScalarGridSpec(
            num_scalar_prefetch=0,
            grid=(n_tiles,),
            in_specs=[
                pl.BlockSpec((tile_b, D_H), lambda i: (i, 0)),    # h, tiled over batch
                pl.BlockSpec((W_ROWS, PAD), lambda i: (0, 0)),    # weight slab, resident
                pl.BlockSpec((8, PAD),      lambda i: (0, 0)),    # vector slab, resident
            ],
            out_specs=pl.BlockSpec((tile_b, N_LOGITS), lambda i: (i, 0)),
        ),
        compiler_params=pltpu.CompilerParams(
            dimension_semantics=("parallel",)),                   # v7x: shard tiles on both TCs
        cost_estimate=pl.CostEstimate(
            flops=flops, transcendentals=0, bytes_accessed=bytes_accessed),
    )(h, w_slab, v_slab)
    return out


# ---- parameter construction / host-side folding ------------------------------
def make_params(key):
    """Deterministic synthetic parameters (PyTorch-Linear style, stored as (in,out))."""
    ks = jax.random.split(key, 12)

    def lin(k, fan_in, fan_out):
        bound = 1.0 / jnp.sqrt(fan_in)
        kw, kb = jax.random.split(k)
        w = jax.random.uniform(kw, (fan_in, fan_out), jnp.float32, -bound, bound)
        b = jax.random.uniform(kb, (1, fan_out), jnp.float32, -bound, bound)
        return w, b

    w1, b1 = lin(ks[0], D_H, D_ENC1)
    # BatchNorm1d(D_ENC1) eval-mode params
    gamma = 1.0 + 0.1 * jax.random.normal(ks[1], (1, D_ENC1), jnp.float32)
    beta  = 0.1 * jax.random.normal(ks[2], (1, D_ENC1), jnp.float32)
    rmean = 0.1 * jax.random.normal(ks[3], (1, D_ENC1), jnp.float32)
    rvar  = jnp.abs(1.0 + 0.1 * jax.random.normal(ks[4], (1, D_ENC1), jnp.float32))
    eps = 1e-5
    s1 = gamma / jnp.sqrt(rvar + eps)           # folded BN scale
    t1 = (b1 - rmean) * s1 + beta               # folded Linear-bias + BN shift

    w2, b2 = lin(ks[5], D_ENC1, D_LAT)
    w3, b3 = lin(ks[6], D_LAT, D_CLS)
    w4, b4 = lin(ks[7], D_CLS, N_LOGITS)
    return (w1, s1, t1, w2, b2, w3, b3, w4, b4)


def pack_params(params, compute_dtype=jnp.float32):
    """Fold the bias-only Linear chain and pack everything into 2 padded slabs.

    NOTE: correctness of the w23 fold relies on the padded lanes of s1/t1 (and the
    padded columns of w1) being exactly zero, so padded lanes of x stay 0 after ReLU.
    """
    (w1, s1, t1, w2, b2, w3, b3, w4, b4) = params
    # encoder[6] Linear(32->16) followed directly by classifier Linear(16->8):
    # no nonlinearity in between -> exact algebraic fold (done in f32).
    w23 = w2 @ w3                     # (32, 8)
    b23 = b2 @ w3 + b3                # (1, 8)

    def pad_w(w, rows):
        r, c = w.shape
        return jnp.pad(w, ((0, rows - r), (0, PAD - c)))

    def pad_v(v):
        return jnp.pad(v, ((0, 0), (0, PAD - v.shape[1])))

    w_slab = jnp.concatenate(
        [pad_w(w1, D_H), pad_w(w23, PAD), pad_w(w4, PAD)], axis=0
    ).astype(compute_dtype)                                   # (320, 128)
    v_slab = jnp.concatenate(
        [pad_v(s1), pad_v(t1), pad_v(b23), pad_v(b4),
         jnp.zeros((4, PAD), jnp.float32)], axis=0)           # (8, 128), f32
    return (w_slab, v_slab)


def _reference(h, params):
    (w1, s1, t1, w2, b2, w3, b3, w4, b4) = params
    x = jnp.maximum(h @ w1 * s1 + t1, 0.0)
    x = x @ w2 + b2
    x = jnp.maximum(x @ w3 + b3, 0.0)
    return x @ w4 + b4


if __name__ == "__main__":
    key = jax.random.PRNGKey(0)
    k_h, k_h2, k_p = jax.random.split(key, 3)
    params = make_params(k_p)
    packed = pack_params(params)          # f32 path (pass jnp.bfloat16 for v6e/v7x serving)

    # main check at BATCH=8 (single grid step)
    h = jax.random.normal(k_h, (BATCH, D_H), jnp.float32)
    logits = jax.block_until_ready(submodel_forward(h, packed))
    ref = _reference(h, params)
    assert logits.shape == (BATCH, N_LOGITS)
    assert jnp.allclose(logits, ref, atol=1e-4, rtol=1e-4)

    # second check: B=20 -> tile_b=16, 2 "parallel" grid steps, partial last block
    # (exercises the no-host-pad ragged path and the narrow masked-store output)
    h2 = jax.random.normal(k_h2, (20, D_H), jnp.float32)
    logits2 = jax.block_until_ready(submodel_forward(h2, packed))
    ref2 = _reference(h2, params)
    assert logits2.shape == (20, N_LOGITS)
    assert jnp.allclose(logits2, ref2, atol=1e-4, rtol=1e-4)

    print("KERNEL_OK")
</pallas_src>

<mosaic_0001>
module attributes {stable_mosaic.version = 11 : i64} {
  func.func @_submodel_kernel(%arg0: i32, %arg1: memref<8x64xf32, #tpu.memory_space<vmem>>, %arg2: memref<320x128xf32, #tpu.memory_space<vmem>>, %arg3: memref<8x128xf32, #tpu.memory_space<vmem>>, %arg4: memref<8x2xf32, #tpu.memory_space<vmem>>) attributes {dimension_semantics = [#tpu.dimension_semantics<parallel>], iteration_bounds = array<i64: 1>, scalar_prefetch = 0 : i64, scratch_operands = 0 : i64, tpu.core_type = #tpu.core_type<tc>, window_params = [{transform_indices = @transform_0, window_bounds = array<i64: 8, 64>}, {pipeline_mode = #tpu.pipeline_mode<synchronous>, transform_indices = @transform_1, window_bounds = array<i64: 320, 128>}, {pipeline_mode = #tpu.pipeline_mode<synchronous>, transform_indices = @transform_2, window_bounds = array<i64: 8, 128>}, {transform_indices = @transform_3, window_bounds = array<i64: 8, 2>}]} {
    %c0 = arith.constant 0 : index
    %c0_0 = arith.constant 0 : index
    %0 = vector.load %arg1[%c0, %c0_0] : memref<8x64xf32, #tpu.memory_space<vmem>>, vector<8x64xf32>
    %c0_1 = arith.constant 0 : index
    %c0_2 = arith.constant 0 : index
    %1 = vector.load %arg2[%c0_1, %c0_2] : memref<320x128xf32, #tpu.memory_space<vmem>>, vector<64x128xf32>
    %c64 = arith.constant 64 : index
    %c0_3 = arith.constant 0 : index
    %2 = vector.load %arg2[%c64, %c0_3] : memref<320x128xf32, #tpu.memory_space<vmem>>, vector<128x128xf32>
    %c192 = arith.constant 192 : index
    %c0_4 = arith.constant 0 : index
    %3 = vector.load %arg2[%c192, %c0_4] : memref<320x128xf32, #tpu.memory_space<vmem>>, vector<128x128xf32>
    %c0_5 = arith.constant 0 : index
    %c0_6 = arith.constant 0 : index
    %4 = vector.load %arg3[%c0_5, %c0_6] : memref<8x128xf32, #tpu.memory_space<vmem>>, vector<1x128xf32>
    %c1 = arith.constant 1 : index
    %c0_7 = arith.constant 0 : index
    %5 = vector.load %arg3[%c1, %c0_7] : memref<8x128xf32, #tpu.memory_space<vmem>>, vector<1x128xf32>
    %c2 = arith.constant 2 : index
    %c0_8 = arith.constant 0 : index
    %6 = vector.load %arg3[%c2, %c0_8] : memref<8x128xf32, #tpu.memory_space<vmem>>, vector<1x128xf32>
    %c3 = arith.constant 3 : index
    %c0_9 = arith.constant 0 : index
    %7 = vector.load %arg3[%c3, %c0_9] : memref<8x128xf32, #tpu.memory_space<vmem>>, vector<1x128xf32>
    %cst = arith.constant dense<0.000000e+00> : vector<8x128xf32>
    %8 = tpu.matmul %0, %1, %cst {dimension_numbers = #tpu.dot_dimension_numbers<[1], [0], [0], [1], [0, 0, 1, 1], [], []>} : vector<8x64xf32>, vector<64x128xf32>, vector<8x128xf32> -> vector<8x128xf32>
    %9 = vector.broadcast %4 : vector<1x128xf32> to vector<8x128xf32>
    %10 = arith.mulf %8, %9 : vector<8x128xf32>
    %11 = vector.broadcast %5 : vector<1x128xf32> to vector<8x128xf32>
    %12 = arith.addf %10, %11 : vector<8x128xf32>
    %cst_10 = arith.constant 0.000000e+00 : f32
    %13 = vector.broadcast %cst_10 : f32 to vector<8x128xf32>
    %14 = arith.maximumf %12, %13 : vector<8x128xf32>
    %cst_11 = arith.constant dense<0.000000e+00> : vector<8x128xf32>
    %15 = tpu.matmul %14, %2, %cst_11 {dimension_numbers = #tpu.dot_dimension_numbers<[1], [0], [0], [1], [0, 0, 1, 1], [], []>} : vector<8x128xf32>, vector<128x128xf32>, vector<8x128xf32> -> vector<8x128xf32>
    %16 = vector.broadcast %6 : vector<1x128xf32> to vector<8x128xf32>
    %17 = arith.addf %15, %16 : vector<8x128xf32>
    %cst_12 = arith.constant 0.000000e+00 : f32
    %18 = vector.broadcast %cst_12 : f32 to vector<8x128xf32>
    %19 = arith.maximumf %17, %18 : vector<8x128xf32>
    %cst_13 = arith.constant dense<0.000000e+00> : vector<8x128xf32>
    %20 = tpu.matmul %19, %3, %cst_13 {dimension_numbers = #tpu.dot_dimension_numbers<[1], [0], [0], [1], [0, 0, 1, 1], [], []>} : vector<8x128xf32>, vector<128x128xf32>, vector<8x128xf32> -> vector<8x128xf32>
    %21 = vector.broadcast %7 : vector<1x128xf32> to vector<8x128xf32>
    %22 = arith.addf %20, %21 : vector<8x128xf32>
    %23 = vector.extract_strided_slice %22 {offsets = [0, 0], sizes = [8, 2], strides = [1, 1]} : vector<8x128xf32> to vector<8x2xf32>
    %c0_14 = arith.constant 0 : index
    %c0_15 = arith.constant 0 : index
    %24 = vector.load %arg4[%c0_14, %c0_15] : memref<8x2xf32, #tpu.memory_space<vmem>>, vector<8x2xf32>
    tpu.vector_store %arg4[%c0_14, %c0_15], %23 {strides = array<i32>} : memref<8x2xf32, #tpu.memory_space<vmem>>, vector<8x2xf32>,
    return
  }
  func.func @transform_0(%arg0: i32) -> (i32, i32) {
    %c0_i32 = arith.constant 0 : i32
    %c0_i32_0 = arith.constant 0 : i32
    return %arg0, %c0_i32 : i32, i32
  }
  func.func @transform_1(%arg0: i32) -> (i32, i32) {
    %c0_i32 = arith.constant 0 : i32
    %c0_i32_0 = arith.constant 0 : i32
    %c0_i32_1 = arith.constant 0 : i32
    return %c0_i32, %c0_i32_0 : i32, i32
  }
  func.func @transform_2(%arg0: i32) -> (i32, i32) {
    %c0_i32 = arith.constant 0 : i32
    %c0_i32_0 = arith.constant 0 : i32
    %c0_i32_1 = arith.constant 0 : i32
    return %c0_i32, %c0_i32_0 : i32, i32
  }
  func.func @transform_3(%arg0: i32) -> (i32, i32) {
    %c0_i32 = arith.constant 0 : i32
    %c0_i32_0 = arith.constant 0 : i32
    return %arg0, %c0_i32 : i32, i32
  }
}

</mosaic_0001>

<llo_original>
// kernel: tpu_custom_call.1
$region0: #{tpu_custom_call.1}
  #allocation0 [shape = 'u32[]', space=smem, size = 0x4, offset = 0x4, fixed_abs, tag = 'smem constant byte address 0x4 - core index']
  #allocation1 [shape = 'u32[72,128]{1,0:T(1,128)}', space=vmem, size = 0x9000, scoped, tag = 'internal scratch']
  %s0 = inlined_call_operand.hbm [shape: f32[8,64], index: 0, kind: input, shape index: {}]
  %s1 = inlined_call_operand.hbm [shape: f32[320,128], index: 1, kind: input, shape index: {}]
  %s2 = inlined_call_operand.hbm [shape: f32[8,128], index: 2, kind: input, shape index: {}]
  %s3 = inlined_call_operand.vmem [shape: f32[8,2], index: 3, kind: output, shape index: {}]
  %s4 = sld [smem:[#allocation0]]
  $region34: #{tpu_custom_call.1} parent=0
    _
  %s6 = ssub.s32 1, %s4
  %s7 = scalar_select 0, %s6, %s4
  $region1: #{tpu_custom_call.1} parent=0
    #allocation2 [shape = 'u8[4096]{0}', space=vmem, size = 0x1000, scoped, tag = 'input window, operand 0, single buffered']
    #allocation3 [shape = 's32[1]{0}', space=sflag, size = 0x4, scoped, tag = 'scoped memory for tpu_custom_call.1']
    #allocation4 [shape = 'u8[163840]{0}', space=vmem, size = 0x28000, scoped, tag = 'input window, operand 1, single buffered']
    #allocation5 [shape = 's32[1]{0}', space=sflag, size = 0x4, scoped, tag = 'scoped memory for tpu_custom_call.1']
    #allocation6 [shape = 'u8[4096]{0}', space=vmem, size = 0x1000, scoped, tag = 'input window, operand 2, single buffered']
    %8 = vsyncpa [#allocation3], 0
    %9 = vsyncpa [#allocation5], 0
    // Predicated region
    $region2: #{tpu_custom_call.1} parent=1 // pred_check
      _
    $region3: #{tpu_custom_call.1} parent=1 // pred_check_branch
      %11 = sbr.rel (0) target = $region5
    $region4: #{tpu_custom_call.1} parent=1 // pred_region
      %13 = vsyncadd [#allocation3], 0
      %s15 = sshll.u32 %s0, 4
      %s16 = int_to_ptr.hbm [resolvable:$true] %s15
      %s17 = sshll.u32 [#allocation2], 4
      %s18 = int_to_ptr.vmem [resolvable:$true] %s17
      %20 = dma.hbm_to_vmem [thread:$0]  %s16, 128, %s18, [#allocation3]
    $region5: #{tpu_custom_call.1} parent=1 // pred_fallthru
      _
    // Predicated region
    $region6: #{tpu_custom_call.1} parent=1 // pred_check
      _
    $region7: #{tpu_custom_call.1} parent=1 // pred_check_branch
      %22 = sbr.rel (0) target = $region9
    $region8: #{tpu_custom_call.1} parent=1 // pred_region
      %24 = vsyncadd [#allocation5], 0
      %s25 = sshll.u32 %s1, 4
      %s26 = int_to_ptr.hbm [resolvable:$true] %s25
      %s27 = sshll.u32 [#allocation4], 4
      %s28 = int_to_ptr.vmem [resolvable:$true] %s27
      %33 = dma.hbm_to_vmem [thread:$0]  %s26, 5120, %s28, [#allocation5], 128, 128, 8
    $region9: #{tpu_custom_call.1} parent=1 // pred_fallthru
      _
    // Predicated region
    $region10: #{tpu_custom_call.1} parent=1 // pred_check
      _
    $region11: #{tpu_custom_call.1} parent=1 // pred_check_branch
      %35 = sbr.rel (0) target = $region13
    $region12: #{tpu_custom_call.1} parent=1 // pred_region
      %37 = vsyncadd [#allocation5], 0
      %s39 = sshll.u32 %s2, 4
      %s40 = int_to_ptr.hbm [resolvable:$true] %s39
      %s41 = sshll.u32 [#allocation6], 4
      %s42 = int_to_ptr.vmem [resolvable:$true] %s41
      %44 = dma.hbm_to_vmem [thread:$0]  %s40, 128, %s42, [#allocation5]
    $region13: #{tpu_custom_call.1} parent=1 // pred_fallthru
      _
    // Predicated region
    $region14: #{tpu_custom_call.1} parent=1 // pred_check
      _
    $region15: #{tpu_custom_call.1} parent=1 // pred_check_branch
      %46 = sbr.rel (0) target = $region17
    $region16: #{tpu_custom_call.1} parent=1 // pred_region
      %48 = dma.done [#allocation3], 128
    $region17: #{tpu_custom_call.1} parent=1 // pred_fallthru
      _
    // Predicated region
    $region18: #{tpu_custom_call.1} parent=1 // pred_check
      _
    $region19: #{tpu_custom_call.1} parent=1 // pred_check_branch
      %50 = sbr.rel (0) target = $region21
    $region20: #{tpu_custom_call.1} parent=1 // pred_region
      %52 = dma.done [#allocation5], 5120
    $region21: #{tpu_custom_call.1} parent=1 // pred_fallthru
      _
    // Predicated region
    $region22: #{tpu_custom_call.1} parent=1 // pred_check
      _
    $region23: #{tpu_custom_call.1} parent=1 // pred_check_branch
      %54 = sbr.rel (0) target = $region25
    $region24: #{tpu_custom_call.1} parent=1 // pred_region
      %56 = dma.done [#allocation5], 128
    $region25: #{tpu_custom_call.1} parent=1 // pred_fallthru
      _
    %v57 = vld [vmem:[#allocation2] sm:$0xff]
    %v58 = vld [vmem:[#allocation4] sm:$0xff]
    %v59 = vld [vmem:[#allocation4 + $0x8] sm:$0xff]
    %v60 = vld [vmem:[#allocation4 + $0x10] sm:$0xff]
    %v61 = vld [vmem:[#allocation4 + $0x18] sm:$0xff]
    %v62 = vld [vmem:[#allocation4 + $0x20] sm:$0xff]
    %v63 = vld [vmem:[#allocation4 + $0x28] sm:$0xff]
    %v64 = vld [vmem:[#allocation4 + $0x30] sm:$0xff]
    %v65 = vld [vmem:[#allocation4 + $0x38] sm:$0xff]
    %v66 = vld [vmem:[#allocation4 + $0x40] sm:$0xff]
    %v67 = vld [vmem:[#allocation4 + $0x48] sm:$0xff]
    %v68 = vld [vmem:[#allocation4 + $0x50] sm:$0xff]
    %v69 = vld [vmem:[#allocation4 + $0x58] sm:$0xff]
    %v70 = vld [vmem:[#allocation4 + $0x60] sm:$0xff]
    %v71 = vld [vmem:[#allocation4 + $0x68] sm:$0xff]
    %v72 = vld [vmem:[#allocation4 + $0x70] sm:$0xff]
    %v73 = vld [vmem:[#allocation4 + $0x78] sm:$0xff]
    %v74 = vld [vmem:[#allocation4 + $0x80] sm:$0xff]
    %v75 = vld [vmem:[#allocation4 + $0x88] sm:$0xff]
    %v76 = vld [vmem:[#allocation4 + $0x90] sm:$0xff]
    %v77 = vld [vmem:[#allocation4 + $0x98] sm:$0xff]
    %v78 = vld [vmem:[#allocation4 + $0xa0] sm:$0xff]
    %v79 = vld [vmem:[#allocation4 + $0xa8] sm:$0xff]
    %v80 = vld [vmem:[#allocation4 + $0xb0] sm:$0xff]
    %v81 = vld [vmem:[#allocation4 + $0xb8] sm:$0xff]
    %v82 = vld [vmem:[#allocation4 + $0xc0] sm:$0xff]
    %v83 = vld [vmem:[#allocation4 + $0xc8] sm:$0xff]
    %v84 = vld [vmem:[#allocation4 + $0xd0] sm:$0xff]
    %v85 = vld [vmem:[#allocation4 + $0xd8] sm:$0xff]
    %v86 = vld [vmem:[#allocation4 + $0xe0] sm:$0xff]
    %v87 = vld [vmem:[#allocation4 + $0xe8] sm:$0xff]
    %v88 = vld [vmem:[#allocation4 + $0xf0] sm:$0xff]
    %v89 = vld [vmem:[#allocation4 + $0xf8] sm:$0xff]
    %v90 = vld [vmem:[#allocation4 + $0x100] sm:$0xff]
    %v91 = vld [vmem:[#allocation4 + $0x108] sm:$0xff]
    %v92 = vld [vmem:[#allocation4 + $0x110] sm:$0xff]
    %v93 = vld [vmem:[#allocation4 + $0x118] sm:$0xff]
    %v94 = vld [vmem:[#allocation4 + $0x120] sm:$0xff]
    %v95 = vld [vmem:[#allocation4 + $0x128] sm:$0xff]
    %v96 = vld [vmem:[#allocation4 + $0x130] sm:$0xff]
    %v97 = vld [vmem:[#allocation4 + $0x138] sm:$0xff]
    %v98 = vld [vmem:[#allocation6] sm:$0x1]
    %v99 = vld [vmem:[#allocation6 + $0x1] sm:$0x1]
    %v100 = vld [vmem:[#allocation6 + $0x2] sm:$0x1]
    %v101 = vld [vmem:[#allocation6 + $0x3] sm:$0x1]
    %vm102 = vcmask 523264
    %v104 = vsel %vm102, %v57, 0
    %106 = vmatpush.msra.mxu0 0.0
    %107 = vmatpush.msra.mxu0 0.0
    %108 = vmatpush.msra.mxu0 0.0
    %109 = vmatpush.msra.mxu0 0.0
    %110 = vmatpush.msra.mxu0 0.0
    %111 = vmatpush.msra.mxu0 0.0
    %112 = vmatpush.msra.mxu0 0.0
    %113 = vmatpush.msra.mxu0 0.0
    %114 = vmatpush.msra.mxu0 %v65
    %115 = vmatpush.msra.mxu0 %v64
    %116 = vmatpush.msra.mxu0 %v63
    %117 = vmatpush.msra.mxu0 %v62
    %118 = vmatpush.msra.mxu0 %v61
    %119 = vmatpush.msra.mxu0 %v60
    %120 = vmatpush.msra.mxu0 %v59
    %121 = vmatpush.msra.mxu0 %v58
    %122 = vmatmul.f32.gmra.mxu0 %v104
    %v123 = vpop.f32.mrf.mxu0
    %v124 = vadd.f32 0.0, %v123
    %125 = vdwg.mxu0
    %v126 = vperm.slane %v98, 0
    %v127 = vmul.f32 %v124, %v126
    %v128 = vperm.slane %v99, 0
    %v129 = vadd.f32 %v127, %v128
    %v130 = vmax.f32 %v129, 0.0
    %v131 = vperm.slane %v100, 0
    %132 = vmatpush.msra.mxu0 %v81
    %133 = vmatpush.msra.mxu0 %v80
    %134 = vmatpush.msra.mxu0 %v79
    %135 = vmatpush.msra.mxu0 %v78
    %136 = vmatpush.msra.mxu0 %v77
    %137 = vmatpush.msra.mxu0 %v76
    %138 = vmatpush.msra.mxu0 %v75
    %139 = vmatpush.msra.mxu0 %v74
    %140 = vmatpush.msra.mxu0 %v73
    %141 = vmatpush.msra.mxu0 %v72
    %142 = vmatpush.msra.mxu0 %v71
    %143 = vmatpush.msra.mxu0 %v70
    %144 = vmatpush.msra.mxu0 %v69
    %145 = vmatpush.msra.mxu0 %v68
    %146 = vmatpush.msra.mxu0 %v67
    %147 = vmatpush.msra.mxu0 %v66
    %148 = vmatmul.f32.gmra.mxu0 %v130
    %v149 = vpop.f32.mrf.mxu0
    %v150 = vadd.f32 %v131, %v149
    %151 = vdwg.mxu0
    %v152 = vmax.f32 %v150, 0.0
    %v153 = vperm.slane %v101, 0
    %154 = vmatpush.msra.mxu0 %v97
    %155 = vmatpush.msra.mxu0 %v96
    %156 = vmatpush.msra.mxu0 %v95
    %157 = vmatpush.msra.mxu0 %v94
    %158 = vmatpush.msra.mxu0 %v93
    %159 = vmatpush.msra.mxu0 %v92
    %160 = vmatpush.msra.mxu0 %v91
    %161 = vmatpush.msra.mxu0 %v90
    %162 = vmatpush.msra.mxu0 %v89
    %163 = vmatpush.msra.mxu0 %v88
    %164 = vmatpush.msra.mxu0 %v87
    %165 = vmatpush.msra.mxu0 %v86
    %166 = vmatpush.msra.mxu0 %v85
    %167 = vmatpush.msra.mxu0 %v84
    %168 = vmatpush.msra.mxu0 %v83
    %169 = vmatpush.msra.mxu0 %v82
    %170 = vmatmul.f32.gmra.mxu0 %v152
    %v171 = vpop.f32.mrf.mxu0
    %v172 = vadd.f32 %v153, %v171
    %173 = vdwg.mxu0
    %vm174 = vcmask 15360
    %175 = vst.msk [vmem:[%s3] sm:$0xff] %vm174, %v172
    // Predicated region
    $region26: #{tpu_custom_call.1} parent=1 // pred_check
      _
    $region27: #{tpu_custom_call.1} parent=1 // pred_check_branch
      %177 = sbr.rel (0) target = $region29
    $region28: #{tpu_custom_call.1} parent=1 // pred_region
      _
    $region29: #{tpu_custom_call.1} parent=1 // pred_fallthru
      _
    // Predicated region
    $region30: #{tpu_custom_call.1} parent=1 // pred_check
      _
    $region31: #{tpu_custom_call.1} parent=1 // pred_check_branch
      %179 = sbr.rel (0) target = $region33
    $region32: #{tpu_custom_call.1} parent=1 // pred_region
      _
    $region33: #{tpu_custom_call.1} parent=1 // pred_fallthru
      _
    %180 = vsyncpa [#allocation3], 1
    %181 = vsyncpa [#allocation5], 1

</llo_original>
